<compile_context>
chip_gen: v7x
topology: tpu7x:2x2x1
jax: 0.10.0
libtpu: 0.0.40
codegen_flags: <defaults>
</compile_context>

<pallas_src>
import functools

import jax
import jax.numpy as jnp
from jax.experimental import pallas as pl
from jax.experimental.pallas import tpu as pltpu


# ---------------------------------------------------------------------------
# Fused kernel: GEMM (folded convT + fc, int8 weight) + dequant scale +
# constant row + hardswish tail.
#   x_ref: (tn, K) f32      w_ref: (K, Fout) int8
#   s_ref: (1, Fout) f32    c_ref: (1, Fout) f32     o_ref: (tn, Fout) f32
# ---------------------------------------------------------------------------
def fused_gemm_hardswish_kernel(x_ref, w_ref, s_ref, c_ref, o_ref):
    acc = jnp.dot(
        x_ref[...].astype(jnp.bfloat16),          # bf16 MXU inputs
        w_ref[...].astype(jnp.bfloat16),          # int8 -> bf16 is exact
        preferred_element_type=jnp.float32,       # f32 accumulation
    )
    v3 = acc * s_ref[...] + c_ref[...]            # per-column dequant + const
    v6 = jnp.minimum(jnp.maximum(v3 + 3.0, 0.0), 6.0)
    o_ref[...] = v3 * v6 * (1.0 / 6.0)


# ---------------------------------------------------------------------------
# One-time parameter preparation (outside the hot path):
#   * fold the 1x1 ConvTranspose weight into the even-position fc columns,
#   * quantize the folded weight to int8 with per-output-column scales,
#   * precompute the constant row (fc_w @ broadcast(ct_b) + fc_b).
# ---------------------------------------------------------------------------
def prepare_params(ct_w, ct_b, fc_w, fc_b, H, W):
    Cin, Cout = ct_w.shape[0], ct_w.shape[1]
    Hout, Wout = 2 * H - 1, 2 * W - 1             # ConvTranspose2d k=1, stride=2
    Fout, Fin = fc_w.shape
    assert Fin == Cout * Hout * Wout

    w_ct = ct_w[:, :, 0, 0]                                     # (Cin, Cout)
    fc_w_r = fc_w.reshape(Fout, Cout, Hout, Wout)
    fc_w_even = fc_w_r[:, :, ::2, ::2]                          # (Fout,Cout,H,W)

    # Combined weight for the x-dependent path, rows ordered as
    # x.reshape(N, Cin*H*W) (row-major over (ci, h, w)).
    w_comb = jnp.einsum("ic,jchw->ihwj", w_ct, fc_w_even)       # (Cin,H,W,Fout)
    w_comb = w_comb.reshape(Cin * H * W, Fout).astype(jnp.float32)

    # Weight-only int8 quantization, per output column.
    absmax = jnp.max(jnp.abs(w_comb), axis=0)                   # (Fout,)
    scale = jnp.maximum(absmax, 1e-30) / 127.0
    w_q = jnp.clip(jnp.round(w_comb / scale[None, :]), -127, 127).astype(jnp.int8)
    scale_row = scale.reshape(1, Fout).astype(jnp.float32)

    # Constant term: every convT output position carries +ct_b, so the full
    # fc_w (even AND odd positions) contracts against the broadcast bias.
    bias_bcast = jnp.broadcast_to(
        ct_b[:, None, None], (Cout, Hout, Wout)
    ).reshape(Fin)
    const_row = (fc_w @ bias_bcast + fc_b).reshape(1, Fout).astype(jnp.float32)
    return w_q, scale_row, const_row


@functools.partial(jax.jit, static_argnames=("batch_tile",))
def model_forward(x, w_q, scale_row, const_row, *, batch_tile=128):
    """x: (N, Cin, H, W); w_q: (K, Fout) int8; scale/const: (1, Fout) f32."""
    N = x.shape[0]
    K, Fout = w_q.shape
    x2d = x.reshape(N, K).astype(jnp.float32)

    cost = pl.CostEstimate(
        flops=2 * N * K * Fout,
        bytes_accessed=K * Fout + N * K * 4 + N * Fout * 4 + 2 * Fout * 4,
        transcendentals=0,
    )

    if N >= 2 * batch_tile and N % batch_tile == 0:
        # Large batch: grid over N.  "parallel" lets v7x shard the batch axis
        # across its 2 TensorCores; the weight block index is constant so it
        # is fetched once and kept resident.
        return pl.pallas_call(
            fused_gemm_hardswish_kernel,
            out_shape=jax.ShapeDtypeStruct((N, Fout), jnp.float32),
            grid=(N // batch_tile,),
            in_specs=[
                pl.BlockSpec((batch_tile, K), lambda i: (i, 0)),
                pl.BlockSpec((K, Fout), lambda i: (0, 0)),
                pl.BlockSpec((1, Fout), lambda i: (0, 0)),
                pl.BlockSpec((1, Fout), lambda i: (0, 0)),
            ],
            out_specs=pl.BlockSpec((batch_tile, Fout), lambda i: (i, 0)),
            compiler_params=pltpu.CompilerParams(
                dimension_semantics=("parallel",)),
            cost_estimate=cost,
        )(x2d, w_q, scale_row, const_row)

    # Small batch: single invocation, whole arrays resident in VMEM, no
    # pointless double-buffering of the weight.
    return pl.pallas_call(
        fused_gemm_hardswish_kernel,
        out_shape=jax.ShapeDtypeStruct((N, Fout), jnp.float32),
        in_specs=[
            pl.BlockSpec(memory_space=pltpu.MemorySpace.VMEM),
            pl.BlockSpec(memory_space=pltpu.MemorySpace.VMEM),
            pl.BlockSpec(memory_space=pltpu.MemorySpace.VMEM),
            pl.BlockSpec(memory_space=pltpu.MemorySpace.VMEM),
        ],
        out_specs=pl.BlockSpec(memory_space=pltpu.MemorySpace.VMEM),
        cost_estimate=cost,
    )(x2d, w_q, scale_row, const_row)


# ---------------------------------------------------------------------------
# Pure-JAX unfused f32 reference (validates folding + quantization error).
# ---------------------------------------------------------------------------
def reference_forward(x, ct_w, ct_b, fc_w, fc_b):
    N, Cin, H, W = x.shape
    Cout = ct_w.shape[1]
    Hout, Wout = 2 * H - 1, 2 * W - 1
    dense = jnp.einsum("nihw,io->nohw", x, ct_w[:, :, 0, 0])     # (N,Cout,H,W)
    v1 = jnp.broadcast_to(ct_b[None, :, None, None], (N, Cout, Hout, Wout))
    v1 = v1.at[:, :, ::2, ::2].set(dense + ct_b[None, :, None, None])
    v2 = v1.reshape(N, -1)
    v3 = v2 @ fc_w.T + fc_b
    v6 = jnp.minimum(jnp.maximum(v3 + 3.0, 0.0), 6.0)
    return v3 * v6 / 6.0


if __name__ == "__main__":
    key = jax.random.PRNGKey(0)
    k1, k2, k3, k4, k5, k6 = jax.random.split(key, 6)

    Cin, H, W = 64, 2, 2
    Cout = 128
    Hout, Wout = 2 * H - 1, 2 * W - 1
    Fin = Cout * Hout * Wout      # 1152 (original declared 768 — inconsistent)
    Fout = 1024

    # Deterministic parameters (PyTorch shapes: convT weight (Cin,Cout,1,1),
    # convT bias (Cout,), fc weight (Fout,Fin), fc bias (Fout,)).
    ct_w = 0.05 * jax.random.normal(k2, (Cin, Cout, 1, 1), dtype=jnp.float32)
    ct_b = 0.05 * jax.random.normal(k3, (Cout,), dtype=jnp.float32)
    fc_w = 0.02 * jax.random.normal(k4, (Fout, Fin), dtype=jnp.float32)
    fc_b = 0.02 * jax.random.normal(k5, (Fout,), dtype=jnp.float32)

    # One-time weight folding + int8 quantization (off the hot path).
    w_q, scale_row, const_row = prepare_params(ct_w, ct_b, fc_w, fc_b, H, W)
    jax.block_until_ready((w_q, scale_row, const_row))

    # ---- Small batch (no-grid path) ---------------------------------------
    N = 8
    x = jax.random.normal(k1, (N, Cin, H, W), dtype=jnp.float32)
    out = model_forward(x, w_q, scale_row, const_row)
    jax.block_until_ready(out)
    assert out.shape == (N, Fout) and out.dtype == jnp.float32
    ref = reference_forward(x, ct_w, ct_b, fc_w, fc_b)
    max_err = float(jnp.max(jnp.abs(out - ref)))
    assert max_err < 5e-2, f"small-batch max_err={max_err}"

    # ---- Large batch (gridded, batch-parallel path) -----------------------
    N_big = 256
    x_big = jax.random.normal(k6, (N_big, Cin, H, W), dtype=jnp.float32)
    out_big = model_forward(x_big, w_q, scale_row, const_row)
    jax.block_until_ready(out_big)
    assert out_big.shape == (N_big, Fout) and out_big.dtype == jnp.float32
    ref_big = reference_forward(x_big, ct_w, ct_b, fc_w, fc_b)
    max_err_big = float(jnp.max(jnp.abs(out_big - ref_big)))
    assert max_err_big < 5e-2, f"large-batch max_err={max_err_big}"

    print("KERNEL_OK")
</pallas_src>

<mosaic_0001>
module attributes {stable_mosaic.version = 11 : i64} {
  func.func @fused_gemm_hardswish_kernel(%arg0: memref<8x256xf32, #tpu.memory_space<vmem>>, %arg1: memref<256x1024xi8, #tpu.memory_space<vmem>>, %arg2: memref<1x1024xf32, #tpu.memory_space<vmem>>, %arg3: memref<1x1024xf32, #tpu.memory_space<vmem>>, %arg4: memref<8x1024xf32, #tpu.memory_space<vmem>>) attributes {dimension_semantics = [], scalar_prefetch = 0 : i64, scratch_operands = 0 : i64, tpu.core_type = #tpu.core_type<tc>} {
    %c0 = arith.constant 0 : index
    %c0_0 = arith.constant 0 : index
    %0 = vector.load %arg0[%c0, %c0_0] : memref<8x256xf32, #tpu.memory_space<vmem>>, vector<8x256xf32>
    %1 = arith.truncf %0 : vector<8x256xf32> to vector<8x256xbf16>
    %c0_1 = arith.constant 0 : index
    %c0_2 = arith.constant 0 : index
    %2 = vector.load %arg1[%c0_1, %c0_2] : memref<256x1024xi8, #tpu.memory_space<vmem>>, vector<256x1024xi8>
    %3 = arith.sitofp %2 : vector<256x1024xi8> to vector<256x1024xbf16>
    %cst = arith.constant dense<0.000000e+00> : vector<8x1024xf32>
    %4 = tpu.matmul %1, %3, %cst {dimension_numbers = #tpu.dot_dimension_numbers<[1], [0], [0], [1], [0, 0, 1, 1], [], []>} : vector<8x256xbf16>, vector<256x1024xbf16>, vector<8x1024xf32> -> vector<8x1024xf32>
    %c0_3 = arith.constant 0 : index
    %c0_4 = arith.constant 0 : index
    %5 = vector.load %arg2[%c0_3, %c0_4] : memref<1x1024xf32, #tpu.memory_space<vmem>>, vector<1x1024xf32>
    %6 = vector.broadcast %5 : vector<1x1024xf32> to vector<8x1024xf32>
    %7 = arith.mulf %4, %6 : vector<8x1024xf32>
    %c0_5 = arith.constant 0 : index
    %c0_6 = arith.constant 0 : index
    %8 = vector.load %arg3[%c0_5, %c0_6] : memref<1x1024xf32, #tpu.memory_space<vmem>>, vector<1x1024xf32>
    %9 = vector.broadcast %8 : vector<1x1024xf32> to vector<8x1024xf32>
    %10 = arith.addf %7, %9 : vector<8x1024xf32>
    %cst_7 = arith.constant 3.000000e+00 : f32
    %11 = vector.broadcast %cst_7 : f32 to vector<8x1024xf32>
    %12 = arith.addf %10, %11 : vector<8x1024xf32>
    %cst_8 = arith.constant 0.000000e+00 : f32
    %13 = vector.broadcast %cst_8 : f32 to vector<8x1024xf32>
    %14 = arith.maximumf %12, %13 : vector<8x1024xf32>
    %cst_9 = arith.constant 6.000000e+00 : f32
    %15 = vector.broadcast %cst_9 : f32 to vector<8x1024xf32>
    %16 = arith.minimumf %14, %15 : vector<8x1024xf32>
    %17 = arith.mulf %10, %16 : vector<8x1024xf32>
    %cst_10 = arith.constant 0.166666672 : f32
    %18 = vector.broadcast %cst_10 : f32 to vector<8x1024xf32>
    %19 = arith.mulf %17, %18 : vector<8x1024xf32>
    %c0_11 = arith.constant 0 : index
    %c0_12 = arith.constant 0 : index
    %20 = vector.load %arg4[%c0_11, %c0_12] : memref<8x1024xf32, #tpu.memory_space<vmem>>, vector<8x1024xf32>
    tpu.vector_store %arg4[%c0_11, %c0_12], %19 {strides = array<i32>} : memref<8x1024xf32, #tpu.memory_space<vmem>>, vector<8x1024xf32>,
    return
  }
}

</mosaic_0001>

<llo_original>
// kernel: model_forward.1
$region0: #{model_forward.1}
  #allocation0 [shape = 'u32[]', space=smem, size = 0x4, offset = 0x4, fixed_abs, tag = 'smem constant byte address 0x4 - core index']
  #allocation1 [shape = 'u32[144,128]{1,0:T(1,128)}', space=vmem, size = 0x12000, scoped, tag = 'internal scratch']
  %s0 = inlined_call_operand.vmem [shape: f32[8,256], index: 0, kind: input, shape index: {}]
  %s1 = inlined_call_operand.vmem [shape: s8[256,1024], index: 1, kind: input, shape index: {}]
  %s2 = inlined_call_operand.vmem [shape: f32[1,1024], index: 2, kind: input, shape index: {}]
  %s3 = inlined_call_operand.vmem [shape: f32[1,1024], index: 3, kind: input, shape index: {}]
  %s4 = inlined_call_operand.hbm [shape: f32[8,1024], index: 4, kind: output, shape index: {}]
  %s5 = sld [smem:[#allocation0]]
  $region26: #{model_forward.1} parent=0
    _
  %s7 = ssub.s32 1, %s5
  %s8 = scalar_select 0, %s7, %s5
  $region1: #{model_forward.1} parent=0
    #allocation2 [shape = 'u8[32768]{0}', space=vmem, size = 0x8000, scoped, tag = 'output window, operand 0, single buffered']
    #allocation3 [shape = 's32[1]{0}', space=sflag, size = 0x4, scoped, tag = 'scoped memory for model_forward.1']
    %9 = vsyncpa [#allocation3], 0
    // Predicated region
    $region2: #{model_forward.1} parent=1 // pred_check
      _
    $region3: #{model_forward.1} parent=1 // pred_check_branch
      %11 = sbr.rel (0) target = $region5
    $region4: #{model_forward.1} parent=1 // pred_region
      _
    $region5: #{model_forward.1} parent=1 // pred_fallthru
      _
    // Predicated region
    $region6: #{model_forward.1} parent=1 // pred_check
      _
    $region7: #{model_forward.1} parent=1 // pred_check_branch
      %13 = sbr.rel (0) target = $region9
    $region8: #{model_forward.1} parent=1 // pred_region
      _
    $region9: #{model_forward.1} parent=1 // pred_fallthru
      _
    // Predicated region
    $region10: #{model_forward.1} parent=1 // pred_check
      _
    $region11: #{model_forward.1} parent=1 // pred_check_branch
      %15 = sbr.rel (0) target = $region13
    $region12: #{model_forward.1} parent=1 // pred_region
      _
    $region13: #{model_forward.1} parent=1 // pred_fallthru
      _
    // Predicated region
    $region14: #{model_forward.1} parent=1 // pred_check
      _
    $region15: #{model_forward.1} parent=1 // pred_check_branch
      %17 = sbr.rel (0) target = $region17
    $region16: #{model_forward.1} parent=1 // pred_region
      _
    $region17: #{model_forward.1} parent=1 // pred_fallthru
      _
    %v18 = vld [vmem:[%s0] sm:$0xff]
    %v19 = vld [vmem:[%s0 + $0x8] sm:$0xff]
    %v20 = vpack.c.bf16 %v18, %v18
    %v21 = vpack.c.bf16 %v19, %v19
    %v22 = vld [vmem:[%s1] sm:$0xff]
    %v23 = vld [vmem:[%s1 + $0x8] sm:$0xff]
    %v24 = vld [vmem:[%s1 + $0x10] sm:$0xff]
    %v25 = vld [vmem:[%s1 + $0x18] sm:$0xff]
    %v26 = vld [vmem:[%s1 + $0x20] sm:$0xff]
    %v27 = vld [vmem:[%s1 + $0x28] sm:$0xff]
    %v28 = vld [vmem:[%s1 + $0x30] sm:$0xff]
    %v29 = vld [vmem:[%s1 + $0x38] sm:$0xff]
    %v30 = vld [vmem:[%s1 + $0x40] sm:$0xff]
    %v31 = vld [vmem:[%s1 + $0x48] sm:$0xff]
    %v32 = vld [vmem:[%s1 + $0x50] sm:$0xff]
    %v33 = vld [vmem:[%s1 + $0x58] sm:$0xff]
    %v34 = vld [vmem:[%s1 + $0x60] sm:$0xff]
    %v35 = vld [vmem:[%s1 + $0x68] sm:$0xff]
    %v36 = vld [vmem:[%s1 + $0x70] sm:$0xff]
    %v37 = vld [vmem:[%s1 + $0x78] sm:$0xff]
    %v38 = vld [vmem:[%s1 + $0x80] sm:$0xff]
    %v39 = vld [vmem:[%s1 + $0x88] sm:$0xff]
    %v40 = vld [vmem:[%s1 + $0x90] sm:$0xff]
    %v41 = vld [vmem:[%s1 + $0x98] sm:$0xff]
    %v42 = vld [vmem:[%s1 + $0xa0] sm:$0xff]
    %v43 = vld [vmem:[%s1 + $0xa8] sm:$0xff]
    %v44 = vld [vmem:[%s1 + $0xb0] sm:$0xff]
    %v45 = vld [vmem:[%s1 + $0xb8] sm:$0xff]
    %v46 = vld [vmem:[%s1 + $0xc0] sm:$0xff]
    %v47 = vld [vmem:[%s1 + $0xc8] sm:$0xff]
    %v48 = vld [vmem:[%s1 + $0xd0] sm:$0xff]
    %v49 = vld [vmem:[%s1 + $0xd8] sm:$0xff]
    %v50 = vld [vmem:[%s1 + $0xe0] sm:$0xff]
    %v51 = vld [vmem:[%s1 + $0xe8] sm:$0xff]
    %v52 = vld [vmem:[%s1 + $0xf0] sm:$0xff]
    %v53 = vld [vmem:[%s1 + $0xf8] sm:$0xff]
    %v54 = vld [vmem:[%s1 + $0x100] sm:$0xff]
    %v55 = vld [vmem:[%s1 + $0x108] sm:$0xff]
    %v56 = vld [vmem:[%s1 + $0x110] sm:$0xff]
    %v57 = vld [vmem:[%s1 + $0x118] sm:$0xff]
    %v58 = vld [vmem:[%s1 + $0x120] sm:$0xff]
    %v59 = vld [vmem:[%s1 + $0x128] sm:$0xff]
    %v60 = vld [vmem:[%s1 + $0x130] sm:$0xff]
    %v61 = vld [vmem:[%s1 + $0x138] sm:$0xff]
    %v62 = vld [vmem:[%s1 + $0x140] sm:$0xff]
    %v63 = vld [vmem:[%s1 + $0x148] sm:$0xff]
    %v64 = vld [vmem:[%s1 + $0x150] sm:$0xff]
    %v65 = vld [vmem:[%s1 + $0x158] sm:$0xff]
    %v66 = vld [vmem:[%s1 + $0x160] sm:$0xff]
    %v67 = vld [vmem:[%s1 + $0x168] sm:$0xff]
    %v68 = vld [vmem:[%s1 + $0x170] sm:$0xff]
    %v69 = vld [vmem:[%s1 + $0x178] sm:$0xff]
    %v70 = vld [vmem:[%s1 + $0x180] sm:$0xff]
    %v71 = vld [vmem:[%s1 + $0x188] sm:$0xff]
    %v72 = vld [vmem:[%s1 + $0x190] sm:$0xff]
    %v73 = vld [vmem:[%s1 + $0x198] sm:$0xff]
    %v74 = vld [vmem:[%s1 + $0x1a0] sm:$0xff]
    %v75 = vld [vmem:[%s1 + $0x1a8] sm:$0xff]
    %v76 = vld [vmem:[%s1 + $0x1b0] sm:$0xff]
    %v77 = vld [vmem:[%s1 + $0x1b8] sm:$0xff]
    %v78 = vld [vmem:[%s1 + $0x1c0] sm:$0xff]
    %v79 = vld [vmem:[%s1 + $0x1c8] sm:$0xff]
    %v80 = vld [vmem:[%s1 + $0x1d0] sm:$0xff]
    %v81 = vld [vmem:[%s1 + $0x1d8] sm:$0xff]
    %v82 = vld [vmem:[%s1 + $0x1e0] sm:$0xff]
    %v83 = vld [vmem:[%s1 + $0x1e8] sm:$0xff]
    %v84 = vld [vmem:[%s1 + $0x1f0] sm:$0xff]
    %v85 = vld [vmem:[%s1 + $0x1f8] sm:$0xff]
    %v86 = vunpack.c.l.s8.bf16 %v22
    %v87 = vunpack.c.l.s8.bf16 %v23
    %v88 = vunpack.c.l.s8.bf16 %v24
    %v89 = vunpack.c.l.s8.bf16 %v25
    %v90 = vunpack.c.l.s8.bf16 %v26
    %v91 = vunpack.c.l.s8.bf16 %v27
    %v92 = vunpack.c.l.s8.bf16 %v28
    %v93 = vunpack.c.l.s8.bf16 %v29
    %v94 = vunpack.c.h.s8.bf16 %v22
    %v95 = vunpack.c.h.s8.bf16 %v23
    %v96 = vunpack.c.h.s8.bf16 %v24
    %v97 = vunpack.c.h.s8.bf16 %v25
    %v98 = vunpack.c.h.s8.bf16 %v26
    %v99 = vunpack.c.h.s8.bf16 %v27
    %v100 = vunpack.c.h.s8.bf16 %v28
    %v101 = vunpack.c.h.s8.bf16 %v29
    %v102 = vunpack.c.l.s8.bf16 %v30
    %v103 = vunpack.c.l.s8.bf16 %v31
    %v104 = vunpack.c.l.s8.bf16 %v32
    %v105 = vunpack.c.l.s8.bf16 %v33
    %v106 = vunpack.c.l.s8.bf16 %v34
    %v107 = vunpack.c.l.s8.bf16 %v35
    %v108 = vunpack.c.l.s8.bf16 %v36
    %v109 = vunpack.c.l.s8.bf16 %v37
    %v110 = vunpack.c.h.s8.bf16 %v30
    %v111 = vunpack.c.h.s8.bf16 %v31
    %v112 = vunpack.c.h.s8.bf16 %v32
    %v113 = vunpack.c.h.s8.bf16 %v33
    %v114 = vunpack.c.h.s8.bf16 %v34
    %v115 = vunpack.c.h.s8.bf16 %v35
    %v116 = vunpack.c.h.s8.bf16 %v36
    %v117 = vunpack.c.h.s8.bf16 %v37
    %v118 = vunpack.c.l.s8.bf16 %v38
    %v119 = vunpack.c.l.s8.bf16 %v39
    %v120 = vunpack.c.l.s8.bf16 %v40
    %v121 = vunpack.c.l.s8.bf16 %v41
    %v122 = vunpack.c.l.s8.bf16 %v42
    %v123 = vunpack.c.l.s8.bf16 %v43
    %v124 = vunpack.c.l.s8.bf16 %v44
    %v125 = vunpack.c.l.s8.bf16 %v45
    %v126 = vunpack.c.h.s8.bf16 %v38
    %v127 = vunpack.c.h.s8.bf16 %v39
    %v128 = vunpack.c.h.s8.bf16 %v40
    %v129 = vunpack.c.h.s8.bf16 %v41
    %v130 = vunpack.c.h.s8.bf16 %v42
    %v131 = vunpack.c.h.s8.bf16 %v43
    %v132 = vunpack.c.h.s8.bf16 %v44
    %v133 = vunpack.c.h.s8.bf16 %v45
    %v134 = vunpack.c.l.s8.bf16 %v46
    %v135 = vunpack.c.l.s8.bf16 %v47
    %v136 = vunpack.c.l.s8.bf16 %v48
    %v137 = vunpack.c.l.s8.bf16 %v49
    %v138 = vunpack.c.l.s8.bf16 %v50
    %v139 = vunpack.c.l.s8.bf16 %v51
    %v140 = vunpack.c.l.s8.bf16 %v52
    %v141 = vunpack.c.l.s8.bf16 %v53
    %v142 = vunpack.c.h.s8.bf16 %v46
    %v143 = vunpack.c.h.s8.bf16 %v47
    %v144 = vunpack.c.h.s8.bf16 %v48
    %v145 = vunpack.c.h.s8.bf16 %v49
    %v146 = vunpack.c.h.s8.bf16 %v50
    %v147 = vunpack.c.h.s8.bf16 %v51
    %v148 = vunpack.c.h.s8.bf16 %v52
    %v149 = vunpack.c.h.s8.bf16 %v53
    %v150 = vunpack.c.l.s8.bf16 %v54
    %v151 = vunpack.c.l.s8.bf16 %v55
    %v152 = vunpack.c.l.s8.bf16 %v56
    %v153 = vunpack.c.l.s8.bf16 %v57
    %v154 = vunpack.c.l.s8.bf16 %v58
    %v155 = vunpack.c.l.s8.bf16 %v59
    %v156 = vunpack.c.l.s8.bf16 %v60
    %v157 = vunpack.c.l.s8.bf16 %v61
    %v158 = vunpack.c.h.s8.bf16 %v54
    %v159 = vunpack.c.h.s8.bf16 %v55
    %v160 = vunpack.c.h.s8.bf16 %v56
    %v161 = vunpack.c.h.s8.bf16 %v57
    %v162 = vunpack.c.h.s8.bf16 %v58
    %v163 = vunpack.c.h.s8.bf16 %v59
    %v164 = vunpack.c.h.s8.bf16 %v60
    %v165 = vunpack.c.h.s8.bf16 %v61
    %v166 = vunpack.c.l.s8.bf16 %v62
    %v167 = vunpack.c.l.s8.bf16 %v63
    %v168 = vunpack.c.l.s8.bf16 %v64
    %v169 = vunpack.c.l.s8.bf16 %v65
    %v170 = vunpack.c.l.s8.bf16 %v66
    %v171 = vunpack.c.l.s8.bf16 %v67
    %v172 = vunpack.c.l.s8.bf16 %v68
    %v173 = vunpack.c.l.s8.bf16 %v69
    %v174 = vunpack.c.h.s8.bf16 %v62
    %v175 = vunpack.c.h.s8.bf16 %v63
    %v176 = vunpack.c.h.s8.bf16 %v64
    %v177 = vunpack.c.h.s8.bf16 %v65
    %v178 = vunpack.c.h.s8.bf16 %v66
    %v179 = vunpack.c.h.s8.bf16 %v67
    %v180 = vunpack.c.h.s8.bf16 %v68
    %v181 = vunpack.c.h.s8.bf16 %v69
    %v182 = vunpack.c.l.s8.bf16 %v70
    %v183 = vunpack.c.l.s8.bf16 %v71
    %v184 = vunpack.c.l.s8.bf16 %v72
    %v185 = vunpack.c.l.s8.bf16 %v73
    %v186 = vunpack.c.l.s8.bf16 %v74
    %v187 = vunpack.c.l.s8.bf16 %v75
    %v188 = vunpack.c.l.s8.bf16 %v76
    %v189 = vunpack.c.l.s8.bf16 %v77
    %v190 = vunpack.c.h.s8.bf16 %v70
    %v191 = vunpack.c.h.s8.bf16 %v71
    %v192 = vunpack.c.h.s8.bf16 %v72
    %v193 = vunpack.c.h.s8.bf16 %v73
    %v194 = vunpack.c.h.s8.bf16 %v74
    %v195 = vunpack.c.h.s8.bf16 %v75
    %v196 = vunpack.c.h.s8.bf16 %v76
    %v197 = vunpack.c.h.s8.bf16 %v77
    %v198 = vunpack.c.l.s8.bf16 %v78
    %v199 = vunpack.c.l.s8.bf16 %v79
    %v200 = vunpack.c.l.s8.bf16 %v80
    %v201 = vunpack.c.l.s8.bf16 %v81
    %v202 = vunpack.c.l.s8.bf16 %v82
    %v203 = vunpack.c.l.s8.bf16 %v83
    %v204 = vunpack.c.l.s8.bf16 %v84
    %v205 = vunpack.c.l.s8.bf16 %v85
    %v206 = vunpack.c.h.s8.bf16 %v78
    %v207 = vunpack.c.h.s8.bf16 %v79
    %v208 = vunpack.c.h.s8.bf16 %v80
    %v209 = vunpack.c.h.s8.bf16 %v81
    %v210 = vunpack.c.h.s8.bf16 %v82
    %v211 = vunpack.c.h.s8.bf16 %v83
    %v212 = vunpack.c.h.s8.bf16 %v84
    %v213 = vunpack.c.h.s8.bf16 %v85
    %214 = vmatprep.subr.bf16.mxu0 %v87
    %215 = vmatpush1.bf16.msra.mxu0 %v86
    %216 = vmatprep.subr.bf16.mxu0 %v95
    %217 = vmatpush1.bf16.msra.mxu0 %v94
    %218 = vmatprep.subr.bf16.mxu0 %v103
    %219 = vmatpush1.bf16.msra.mxu0 %v102
    %220 = vmatprep.subr.bf16.mxu0 %v111
    %221 = vmatpush1.bf16.msra.mxu0 %v110
    %222 = vmatprep.subr.bf16.mxu0 %v119
    %223 = vmatpush1.bf16.msra.mxu0 %v118
    %224 = vmatprep.subr.bf16.mxu0 %v127
    %225 = vmatpush1.bf16.msra.mxu0 %v126
    %226 = vmatprep.subr.bf16.mxu0 %v135
    %227 = vmatpush1.bf16.msra.mxu0 %v134
    %228 = vmatprep.subr.bf16.mxu0 %v143
    %229 = vmatpush1.bf16.msra.mxu0 %v142
    %230 = vmatprep.subr.bf16.mxu0 %v151
    %231 = vmatpush1.bf16.msra.mxu0 %v150
    %232 = vmatprep.subr.bf16.mxu0 %v159
    %233 = vmatpush1.bf16.msra.mxu0 %v158
    %234 = vmatprep.subr.bf16.mxu0 %v167
    %235 = vmatpush1.bf16.msra.mxu0 %v166
    %236 = vmatprep.subr.bf16.mxu0 %v175
    %237 = vmatpush1.bf16.msra.mxu0 %v174
    %238 = vmatprep.subr.bf16.mxu0 %v183
    %239 = vmatpush1.bf16.msra.mxu0 %v182
    %240 = vmatprep.subr.bf16.mxu0 %v191
    %241 = vmatpush1.bf16.msra.mxu0 %v190
    %242 = vmatprep.subr.bf16.mxu0 %v199
    %243 = vmatpush1.bf16.msra.mxu0 %v198
    %244 = vmatprep.subr.bf16.mxu0 %v207
    %245 = vmatpush1.bf16.msra.mxu0 %v206
    %246 = vmatprep.mubr.bf16.mxu0 %v21
    %247 = vmatmul.mubr.bf16.gmra.mrb[0].mxu0 %v20
    %v248 = vpop.f32.mrb[0].mxu0
    %v249 = vadd.f32 0.0, %v248
    %v250 = vpop.f32.mrb[0].mxu0
    %v251 = vadd.f32 0.0, %v250
    %v252 = vpop.f32.mrb[0].mxu0
    %v253 = vpop.f32.mrb[0].mxu0
    %254 = vdwg.mxu0
    %255 = vmatprep.subr.bf16.mxu0 %v89
    %256 = vmatpush1.bf16.msra.mxu0 %v88
    %257 = vmatprep.subr.bf16.mxu0 %v97
    %258 = vmatpush1.bf16.msra.mxu0 %v96
    %259 = vmatprep.subr.bf16.mxu0 %v105
    %260 = vmatpush1.bf16.msra.mxu0 %v104
    %261 = vmatprep.subr.bf16.mxu0 %v113
    %262 = vmatpush1.bf16.msra.mxu0 %v112
    %263 = vmatprep.subr.bf16.mxu0 %v121
    %264 = vmatpush1.bf16.msra.mxu0 %v120
    %265 = vmatprep.subr.bf16.mxu0 %v129
    %266 = vmatpush1.bf16.msra.mxu0 %v128
    %267 = vmatprep.subr.bf16.mxu0 %v137
    %268 = vmatpush1.bf16.msra.mxu0 %v136
    %269 = vmatprep.subr.bf16.mxu0 %v145
    %270 = vmatpush1.bf16.msra.mxu0 %v144
    %271 = vmatprep.subr.bf16.mxu0 %v153
    %272 = vmatpush1.bf16.msra.mxu0 %v152
    %273 = vmatprep.subr.bf16.mxu0 %v161
    %274 = vmatpush1.bf16.msra.mxu0 %v160
    %275 = vmatprep.subr.bf16.mxu0 %v169
    %276 = vmatpush1.bf16.msra.mxu0 %v168
    %277 = vmatprep.subr.bf16.mxu0 %v177
    %278 = vmatpush1.bf16.msra.mxu0 %v176
    %279 = vmatprep.subr.bf16.mxu0 %v185
    %280 = vmatpush1.bf16.msra.mxu0 %v184
    %281 = vmatprep.subr.bf16.mxu0 %v193
    %282 = vmatpush1.bf16.msra.mxu0 %v192
    %283 = vmatprep.subr.bf16.mxu0 %v201
    %284 = vmatpush1.bf16.msra.mxu0 %v200
    %285 = vmatprep.subr.bf16.mxu0 %v209
    %286 = vmatpush1.bf16.msra.mxu0 %v208
    %287 = vmatprep.mubr.bf16.mxu0 %v21
    %288 = vmatmul.mubr.bf16.gmra.mrb[0].mxu0 %v20
    %v289 = vpop.f32.mrb[0].mxu0
    %v290 = vadd.f32 0.0, %v289
    %v291 = vpop.f32.mrb[0].mxu0
    %v292 = vadd.f32 0.0, %v291
    %v293 = vpop.f32.mrb[0].mxu0
    %v294 = vpop.f32.mrb[0].mxu0
    %295 = vdwg.mxu0
    %296 = vmatprep.subr.bf16.mxu0 %v91
    %297 = vmatpush1.bf16.msra.mxu0 %v90
    %298 = vmatprep.subr.bf16.mxu0 %v99
    %299 = vmatpush1.bf16.msra.mxu0 %v98
    %300 = vmatprep.subr.bf16.mxu0 %v107
    %301 = vmatpush1.bf16.msra.mxu0 %v106
    %302 = vmatprep.subr.bf16.mxu0 %v115
    %303 = vmatpush1.bf16.msra.mxu0 %v114
    %304 = vmatprep.subr.bf16.mxu0 %v123
    %305 = vmatpush1.bf16.msra.mxu0 %v122
    %306 = vmatprep.subr.bf16.mxu0 %v131
    %307 = vmatpush1.bf16.msra.mxu0 %v130
    %308 = vmatprep.subr.bf16.mxu0 %v139
    %309 = vmatpush1.bf16.msra.mxu0 %v138
    %310 = vmatprep.subr.bf16.mxu0 %v147
    %311 = vmatpush1.bf16.msra.mxu0 %v146
    %312 = vmatprep.subr.bf16.mxu0 %v155
    %313 = vmatpush1.bf16.msra.mxu0 %v154
    %314 = vmatprep.subr.bf16.mxu0 %v163
    %315 = vmatpush1.bf16.msra.mxu0 %v162
    %316 = vmatprep.subr.bf16.mxu0 %v171
    %317 = vmatpush1.bf16.msra.mxu0 %v170
    %318 = vmatprep.subr.bf16.mxu0 %v179
    %319 = vmatpush1.bf16.msra.mxu0 %v178
    %320 = vmatprep.subr.bf16.mxu0 %v187
    %321 = vmatpush1.bf16.msra.mxu0 %v186
    %322 = vmatprep.subr.bf16.mxu0 %v195
    %323 = vmatpush1.bf16.msra.mxu0 %v194
    %324 = vmatprep.subr.bf16.mxu0 %v203
    %325 = vmatpush1.bf16.msra.mxu0 %v202
    %326 = vmatprep.subr.bf16.mxu0 %v211
    %327 = vmatpush1.bf16.msra.mxu0 %v210
    %328 = vmatprep.mubr.bf16.mxu0 %v21
    %329 = vmatmul.mubr.bf16.gmra.mrb[0].mxu0 %v20
    %v330 = vpop.f32.mrb[0].mxu0
    %v331 = vadd.f32 0.0, %v330
    %v332 = vpop.f32.mrb[0].mxu0
    %v333 = vadd.f32 0.0, %v332
    %v334 = vpop.f32.mrb[0].mxu0
    %v335 = vpop.f32.mrb[0].mxu0
    %336 = vdwg.mxu0
    %337 = vmatprep.subr.bf16.mxu0 %v93
    %338 = vmatpush1.bf16.msra.mxu0 %v92
    %339 = vmatprep.subr.bf16.mxu0 %v101
    %340 = vmatpush1.bf16.msra.mxu0 %v100
    %341 = vmatprep.subr.bf16.mxu0 %v109
    %342 = vmatpush1.bf16.msra.mxu0 %v108
    %343 = vmatprep.subr.bf16.mxu0 %v117
    %344 = vmatpush1.bf16.msra.mxu0 %v116
    %345 = vmatprep.subr.bf16.mxu0 %v125
    %346 = vmatpush1.bf16.msra.mxu0 %v124
    %347 = vmatprep.subr.bf16.mxu0 %v133
    %348 = vmatpush1.bf16.msra.mxu0 %v132
    %349 = vmatprep.subr.bf16.mxu0 %v141
    %350 = vmatpush1.bf16.msra.mxu0 %v140
    %351 = vmatprep.subr.bf16.mxu0 %v149
    %352 = vmatpush1.bf16.msra.mxu0 %v148
    %353 = vmatprep.subr.bf16.mxu0 %v157
    %354 = vmatpush1.bf16.msra.mxu0 %v156
    %355 = vmatprep.subr.bf16.mxu0 %v165
    %356 = vmatpush1.bf16.msra.mxu0 %v164
    %357 = vmatprep.subr.bf16.mxu0 %v173
    %358 = vmatpush1.bf16.msra.mxu0 %v172
    %359 = vmatprep.subr.bf16.mxu0 %v181
    %360 = vmatpush1.bf16.msra.mxu0 %v180
    %361 = vmatprep.subr.bf16.mxu0 %v189
    %362 = vmatpush1.bf16.msra.mxu0 %v188
    %363 = vmatprep.subr.bf16.mxu0 %v197
    %364 = vmatpush1.bf16.msra.mxu0 %v196
    %365 = vmatprep.subr.bf16.mxu0 %v205
    %366 = vmatpush1.bf16.msra.mxu0 %v204
    %367 = vmatprep.subr.bf16.mxu0 %v213
    %368 = vmatpush1.bf16.msra.mxu0 %v212
    %369 = vmatprep.mubr.bf16.mxu0 %v21
    %370 = vmatmul.mubr.bf16.gmra.mrb[0].mxu0 %v20
    %v371 = vpop.f32.mrb[0].mxu0
    %v372 = vadd.f32 0.0, %v371
    %v373 = vpop.f32.mrb[0].mxu0
    %v374 = vadd.f32 0.0, %v373
    %v375 = vpop.f32.mrb[0].mxu0
    %v376 = vpop.f32.mrb[0].mxu0
    %377 = vdwg.mxu0
    %v378 = vld [vmem:[%s2] sm:$0xff]
    %v380 = vlaneseq
    %v381 = vshrl.u32 %v380, 7
    %v382 = vsub.s32 0, %v381
    %v383 = vrot.slane %v378, %v382
    %v384 = vlaneseq
    %v385 = vshrl.u32 %v384, 7
    %v386 = vsub.s32 1, %v385
    %v387 = vrot.slane %v378, %v386
    %v388 = vlaneseq
    %v389 = vshrl.u32 %v388, 7
    %v390 = vsub.s32 2, %v389
    %v391 = vrot.slane %v378, %v390
    %v392 = vlaneseq
    %v393 = vshrl.u32 %v392, 7
    %v394 = vsub.s32 3, %v393
    %v395 = vrot.slane %v378, %v394
    %v396 = vlaneseq
    %v397 = vshrl.u32 %v396, 7
    %v398 = vsub.s32 4, %v397
    %v399 = vrot.slane %v378, %v398
    %v400 = vlaneseq
    %v401 = vshrl.u32 %v400, 7
    %v402 = vsub.s32 5, %v401
    %v403 = vrot.slane %v378, %v402
    %v404 = vlaneseq
    %v405 = vshrl.u32 %v404, 7
    %v406 = vsub.s32 6, %v405
    %v407 = vrot.slane %v378, %v406
    %v408 = vlaneseq
    %v409 = vshrl.u32 %v408, 7
    %v410 = vsub.s32 7, %v409
    %v411 = vrot.slane %v378, %v410
    %v420 = vmul.f32 %v249, %v383
    %v421 = vmul.f32 %v251, %v387
    %v422 = vmul.f32 %v290, %v391
    %v423 = vmul.f32 %v292, %v395
    %v424 = vmul.f32 %v331, %v399
    %v425 = vmul.f32 %v333, %v403
    %v426 = vmul.f32 %v372, %v407
    %v427 = vmul.f32 %v374, %v411
    %v428 = vld [vmem:[%s3] sm:$0xff]
    %v430 = vlaneseq
    %v431 = vshrl.u32 %v430, 7
    %v432 = vsub.s32 0, %v431
    %v433 = vrot.slane %v428, %v432
    %v434 = vlaneseq
    %v435 = vshrl.u32 %v434, 7
    %v436 = vsub.s32 1, %v435
    %v437 = vrot.slane %v428, %v436
    %v438 = vlaneseq
    %v439 = vshrl.u32 %v438, 7
    %v440 = vsub.s32 2, %v439
    %v441 = vrot.slane %v428, %v440
    %v442 = vlaneseq
    %v443 = vshrl.u32 %v442, 7
    %v444 = vsub.s32 3, %v443
    %v445 = vrot.slane %v428, %v444
    %v446 = vlaneseq
    %v447 = vshrl.u32 %v446, 7
    %v448 = vsub.s32 4, %v447
    %v449 = vrot.slane %v428, %v448
    %v450 = vlaneseq
    %v451 = vshrl.u32 %v450, 7
    %v452 = vsub.s32 5, %v451
    %v453 = vrot.slane %v428, %v452
    %v454 = vlaneseq
    %v455 = vshrl.u32 %v454, 7
    %v456 = vsub.s32 6, %v455
    %v457 = vrot.slane %v428, %v456
    %v458 = vlaneseq
    %v459 = vshrl.u32 %v458, 7
    %v460 = vsub.s32 7, %v459
    %v461 = vrot.slane %v428, %v460
    %v470 = vadd.f32 %v420, %v433
    %v471 = vadd.f32 %v421, %v437
    %v472 = vadd.f32 %v422, %v441
    %v473 = vadd.f32 %v423, %v445
    %v474 = vadd.f32 %v424, %v449
    %v475 = vadd.f32 %v425, %v453
    %v476 = vadd.f32 %v426, %v457
    %v477 = vadd.f32 %v427, %v461
    %v478 = vadd.f32 %v470, 3.0
    %v479 = vadd.f32 %v471, 3.0
    %v480 = vadd.f32 %v472, 3.0
    %v481 = vadd.f32 %v473, 3.0
    %v482 = vadd.f32 %v474, 3.0
    %v483 = vadd.f32 %v475, 3.0
    %v484 = vadd.f32 %v476, 3.0
    %v485 = vadd.f32 %v477, 3.0
    %v486 = vmax.f32 %v478, 0.0
    %v487 = vmax.f32 %v479, 0.0
    %v488 = vmax.f32 %v480, 0.0
    %v489 = vmax.f32 %v481, 0.0
    %v490 = vmax.f32 %v482, 0.0
    %v491 = vmax.f32 %v483, 0.0
    %v492 = vmax.f32 %v484, 0.0
    %v493 = vmax.f32 %v485, 0.0
    %v494 = vmin.f32 %v486, 6.0
    %v495 = vmin.f32 %v487, 6.0
    %v496 = vmin.f32 %v488, 6.0
    %v497 = vmin.f32 %v489, 6.0
    %v498 = vmin.f32 %v490, 6.0
    %v499 = vmin.f32 %v491, 6.0
    %v500 = vmin.f32 %v492, 6.0
    %v501 = vmin.f32 %v493, 6.0
    %v502 = vmul.f32 %v470, %v494
    %v503 = vmul.f32 %v471, %v495
    %v504 = vmul.f32 %v472, %v496
    %v505 = vmul.f32 %v473, %v497
    %v506 = vmul.f32 %v474, %v498
    %v507 = vmul.f32 %v475, %v499
    %v508 = vmul.f32 %v476, %v500
    %v509 = vmul.f32 %v477, %v501
    %v510 = vmul.f32 %v502, 0.16666667
    %v511 = vmul.f32 %v503, 0.16666667
    %v512 = vmul.f32 %v504, 0.16666667
    %v513 = vmul.f32 %v505, 0.16666667
    %v514 = vmul.f32 %v506, 0.16666667
    %v515 = vmul.f32 %v507, 0.16666667
    %v516 = vmul.f32 %v508, 0.16666667
    %v517 = vmul.f32 %v509, 0.16666667
    %518 = vst [vmem:[#allocation2] sm:$0xff] %v510
    %519 = vst [vmem:[#allocation2 + $0x8] sm:$0xff] %v511
    %520 = vst [vmem:[#allocation2 + $0x10] sm:$0xff] %v512
    %521 = vst [vmem:[#allocation2 + $0x18] sm:$0xff] %v513
    %522 = vst [vmem:[#allocation2 + $0x20] sm:$0xff] %v514
    %523 = vst [vmem:[#allocation2 + $0x28] sm:$0xff] %v515
    %524 = vst [vmem:[#allocation2 + $0x30] sm:$0xff] %v516
    %525 = vst [vmem:[#allocation2 + $0x38] sm:$0xff] %v517
    // Predicated region
    $region18: #{model_forward.1} parent=1 // pred_check
      _
    $region19: #{model_forward.1} parent=1 // pred_check_branch
      %527 = sbr.rel (0) target = $region21
    $region20: #{model_forward.1} parent=1 // pred_region
      %s529 = ssub.s32 1024, 1024
      %530 = vsyncadd [#allocation3], %s529
      %s532 = sshll.u32 [#allocation2], 4
      %s533 = int_to_ptr.vmem [resolvable:$true] %s532
      %535 = dma.vmem_to_hbm [thread:$0]  %s533, 1024, %s4, [#allocation3]
    $region21: #{model_forward.1} parent=1 // pred_fallthru
      _
    // Predicated region
    $region22: #{model_forward.1} parent=1 // pred_check
      _
    $region23: #{model_forward.1} parent=1 // pred_check_branch
      %537 = sbr.rel (0) target = $region25
    $region24: #{model_forward.1} parent=1 // pred_region
      %538 = dma.done [#allocation3], 1024
    $region25: #{model_forward.1} parent=1 // pred_fallthru
      _
    %539 = vsyncpa [#allocation3], 1

</llo_original>
